<compile_context>
chip_gen: v5e
topology: v5e:2x2
jax: 0.10.0
libtpu: 0.0.40
codegen_flags: <defaults>
</compile_context>

<pallas_src>
import functools
import math

import jax
import jax.numpy as jnp
from jax.experimental import pallas as pl
from jax.experimental.pallas import tpu as pltpu

_LRELU_GAIN = math.sqrt(2.0)


def _lrelu(y):
    return jnp.where(y >= 0.0, y, 0.2 * y) * _LRELU_GAIN


def _pixnorm(x):
    return x * jax.lax.rsqrt(jnp.mean(x * x, axis=-1, keepdims=True) + 1e-8)


# ----------------------------------------------------------------------------
# Pallas kernels
# ----------------------------------------------------------------------------
def _mapping_kernel(z_ref, c_ref, ew_ref, eb_ref, w0z_ref, w0c_ref, b0_ref,
                    w1_ref, b1_ref, o_ref):
    """Fused mapping MLP (conditional): pixnorm + embed + pixnorm + fc0 + fc1."""
    z = _pixnorm(z_ref[...].astype(jnp.float32))
    e = jnp.dot(c_ref[...].astype(jnp.float32), ew_ref[...],
                preferred_element_type=jnp.float32) + eb_ref[...]
    e = _pixnorm(e)
    # Split-weight form of concat([z, e]) @ fc0_w  (avoids in-kernel concat).
    h = (jnp.dot(z, w0z_ref[...], preferred_element_type=jnp.float32)
         + jnp.dot(e, w0c_ref[...], preferred_element_type=jnp.float32)
         + b0_ref[...])
    h = _lrelu(h)
    w = jnp.dot(h, w1_ref[...], preferred_element_type=jnp.float32) + b1_ref[...]
    o_ref[...] = _lrelu(w)


def _mapping_kernel_nocond(z_ref, w0z_ref, b0_ref, w1_ref, b1_ref, o_ref):
    """Fused mapping MLP (no class conditioning)."""
    z = _pixnorm(z_ref[...].astype(jnp.float32))
    h = _lrelu(jnp.dot(z, w0z_ref[...], preferred_element_type=jnp.float32)
               + b0_ref[...])
    w = jnp.dot(h, w1_ref[...], preferred_element_type=jnp.float32) + b1_ref[...]
    o_ref[...] = _lrelu(w)


def _synthesis_fused_kernel(const_ref, w_ref, b_ref, rgbw_ref, rgbb_ref,
                            o_ref, *, num_layers):
    """Entire synthesis stack for one sample, resident in VMEM/vregs.

    All layers are 1x1 modulated convs (channel matmuls) + bias + lrelu, which
    commute exactly with nearest upsampling, so the whole chain is evaluated
    once at the 4x4 base resolution.  Modulation/demodulation are already
    folded into the per-sample effective weight w_ref[l, 0] : (Cin, Cout).
    """
    x = const_ref[...].astype(jnp.float32)                       # (HW0, Cin)
    for l in range(num_layers):                                  # tiny, unrolled
        y = jnp.dot(x, w_ref[l, 0], preferred_element_type=jnp.float32)
        y = y + b_ref[l]                                         # (1, Cout)
        x = _lrelu(y)
    # toRGB with lane-dense output: (Cr, Cin) x (HW0, Cin) -> (Cr, HW0)
    rgb = jax.lax.dot_general(rgbw_ref[0], x, (((1,), (1,)), ((), ())),
                              preferred_element_type=jnp.float32)
    rgb = rgb + rgbb_ref[...]                                    # (Cr, 1)
    o_ref[0] = rgb.astype(o_ref.dtype)


# ----------------------------------------------------------------------------
# Pallas wrappers
# ----------------------------------------------------------------------------
def synthesis_fused(const, w_eff, conv_b, rgb_eff, rgb_b):
    """const:(HW0,Cin), w_eff:(L,B,Cin,Cout), conv_b:(L,1,Cout),
    rgb_eff:(B,Cr,Cin), rgb_b:(Cr,1)  ->  (B, Cr, HW0) f32 base-res image."""
    L, B, Cin, Cout = w_eff.shape
    HW0 = const.shape[0]
    Cr = rgb_eff.shape[1]
    kernel = functools.partial(_synthesis_fused_kernel, num_layers=L)
    return pl.pallas_call(
        kernel,
        out_shape=jax.ShapeDtypeStruct((B, Cr, HW0), jnp.float32),
        grid=(B,),
        in_specs=[
            pl.BlockSpec((HW0, Cin), lambda b: (0, 0)),
            pl.BlockSpec((L, 1, Cin, Cout), lambda b: (0, b, 0, 0)),
            pl.BlockSpec((L, 1, Cout), lambda b: (0, 0, 0)),
            pl.BlockSpec((1, Cr, Cin), lambda b: (b, 0, 0)),
            pl.BlockSpec((Cr, 1), lambda b: (0, 0)),
        ],
        out_specs=pl.BlockSpec((1, Cr, HW0), lambda b: (b, 0, 0)),
        compiler_params=pltpu.CompilerParams(
            dimension_semantics=("parallel",)),
    )(const.astype(jnp.float32), w_eff.astype(jnp.float32),
      conv_b.astype(jnp.float32), rgb_eff.astype(jnp.float32),
      rgb_b.astype(jnp.float32))


# ----------------------------------------------------------------------------
# Plain-JAX glue (tiny / pure-broadcast ops deliberately left to XLA)
# ----------------------------------------------------------------------------
def _nearest_upsample_nchw(img, factor):
    """Nearest-neighbor upsample of (B, C, H, W) by `factor`.

    Pure broadcast write of the final 3-channel image (reads 16 px/sample);
    runs at HBM write roofline, which is the unavoidable minimum traffic.
    """
    if factor == 1:
        return img
    B, C, H, W = img.shape
    img = img.reshape(B, C, H, 1, W, 1)
    img = jnp.broadcast_to(img, (B, C, H, factor, W, factor))
    return img.reshape(B, C, H * factor, W * factor)


# ----------------------------------------------------------------------------
# Generator
# ----------------------------------------------------------------------------
class Generator:
    def __init__(self, z_dim, c_dim, w_dim, img_resolution, img_channels,
                 is_mapping=True, channels=32, key=None):
        self.z_dim = z_dim
        self.c_dim = c_dim
        self.w_dim = w_dim
        self.img_resolution = img_resolution
        self.img_channels = img_channels
        self.is_mapping = is_mapping
        self.channels = channels

        # synthesis: one 1x1 modulated conv per resolution level, then toRGB
        self.resolutions = []
        r = 4
        while r <= img_resolution:
            self.resolutions.append(r)
            r *= 2
        self.num_conv = len(self.resolutions)
        self.num_ws = self.num_conv + 1

        if key is None:
            key = jax.random.PRNGKey(0)
        ks = iter(jax.random.split(key, 64))

        def nrm(shape, std):
            return jax.random.normal(next(ks), shape, jnp.float32) * std

        C = channels
        L = self.num_conv

        # --- mapping params ---
        if c_dim > 0:
            self.embed_w = nrm((c_dim, w_dim), 1.0 / math.sqrt(c_dim))
            self.embed_b = jnp.zeros((w_dim,), jnp.float32)
            in0 = z_dim + w_dim
            self.fc0_wz = nrm((z_dim, w_dim), 1.0 / math.sqrt(in0))
            self.fc0_wc = nrm((w_dim, w_dim), 1.0 / math.sqrt(in0))
        else:
            in0 = z_dim
            self.fc0_wz = nrm((z_dim, w_dim), 1.0 / math.sqrt(in0))
            self.fc0_wc = None
        self.fc0_b = jnp.zeros((w_dim,), jnp.float32)
        self.fc1_w = nrm((w_dim, w_dim), 1.0 / math.sqrt(w_dim))
        self.fc1_b = jnp.zeros((w_dim,), jnp.float32)
        # NOTE: w_avg is a fixed zero buffer (not a tracked running mean), so
        # truncation scales ws toward zero -- matches the original intent.
        self.w_avg = jnp.zeros((w_dim,), jnp.float32)

        # --- synthesis params (stacked across levels for batched folding) ---
        self.const = nrm((4 * 4, C), 1.0)                          # (HW0, Cin)
        self.affine_w = nrm((L, w_dim, C), 1.0 / math.sqrt(w_dim))  # (L, w_dim, Cin)
        self.affine_b = jnp.ones((L, C), jnp.float32)               # (L, Cin)
        self.conv_w = nrm((L, C, C), 1.0 / math.sqrt(C))            # (L, Cout, Cin)
        self.conv_b = jnp.zeros((L, 1, C), jnp.float32)             # (L, 1, Cout)
        self.rgb_affine_w = nrm((w_dim, C), 1.0 / math.sqrt(w_dim))
        self.rgb_affine_b = jnp.ones((C,), jnp.float32)
        self.rgb_w = nrm((img_channels, C), 1.0 / math.sqrt(C))     # (Cr, Cin)
        self.rgb_b = jnp.zeros((img_channels,), jnp.float32)

    # -- mapping network: z, c -> ws (B, num_ws, w_dim) -- one fused pallas_call
    def mapping(self, z, c, truncation_psi=1.0, truncation_cutoff=None):
        z = z.astype(jnp.float32)
        B = z.shape[0]
        vmem = pl.BlockSpec(memory_space=pltpu.MemorySpace.VMEM)
        if self.c_dim > 0:
            w = pl.pallas_call(
                _mapping_kernel,
                out_shape=jax.ShapeDtypeStruct((B, self.w_dim), jnp.float32),
                in_specs=[vmem] * 9,
                out_specs=vmem,
            )(z, c.astype(jnp.float32), self.embed_w,
              self.embed_b.reshape(1, -1), self.fc0_wz, self.fc0_wc,
              self.fc0_b.reshape(1, -1), self.fc1_w, self.fc1_b.reshape(1, -1))
        else:
            w = pl.pallas_call(
                _mapping_kernel_nocond,
                out_shape=jax.ShapeDtypeStruct((B, self.w_dim), jnp.float32),
                in_specs=[vmem] * 5,
                out_specs=vmem,
            )(z, self.fc0_wz, self.fc0_b.reshape(1, -1),
              self.fc1_w, self.fc1_b.reshape(1, -1))

        ws = jnp.broadcast_to(w[:, None, :], (B, self.num_ws, self.w_dim))
        if truncation_psi != 1:
            if truncation_cutoff is None:
                ws = self.w_avg + truncation_psi * (ws - self.w_avg)
            else:
                head = self.w_avg + truncation_psi * (ws[:, :truncation_cutoff] - self.w_avg)
                ws = jnp.concatenate([head, ws[:, truncation_cutoff:]], axis=1)
        return ws

    # -- synthesis network: ws -> img (B, img_channels, H, W) --
    def synthesis(self, ws):
        ws = ws.astype(jnp.float32)
        B = ws.shape[0]
        L = self.num_conv

        # Batched host-side fold of style affine + modulation + demodulation
        # into stacked per-sample effective weights (single einsum chain).
        s = jnp.einsum('bld,ldc->lbc', ws[:, :L], self.affine_w)             # (L, B, Cin)
        s = s + self.affine_b[:, None, :]
        w_mod = self.conv_w[:, None, :, :] * s[:, :, None, :]                # (L, B, Cout, Cin)
        d = jax.lax.rsqrt(jnp.sum(w_mod * w_mod, axis=-1, keepdims=True) + 1e-8)
        w_eff = jnp.swapaxes(w_mod * d, 2, 3)                                # (L, B, Cin, Cout)

        s_rgb = jnp.dot(ws[:, L], self.rgb_affine_w) + self.rgb_affine_b     # (B, Cin)
        rgb_eff = self.rgb_w[None, :, :] * s_rgb[:, None, :]                 # (B, Cr, Cin), no demod

        # One fused Pallas kernel: all conv levels + toRGB at 4x4 base res.
        rgb4 = synthesis_fused(self.const, w_eff, self.conv_b,
                               rgb_eff, self.rgb_b.reshape(-1, 1))           # (B, Cr, 16)
        img4 = rgb4.reshape(B, self.img_channels, 4, 4)                      # free view

        # Deferred nearest upsample of the 3-channel image (exact commute
        # with the per-level upsamples of the original formulation).
        factor = self.img_resolution // 4
        return _nearest_upsample_nchw(img4, factor)

    def __call__(self, z, c, truncation_psi=1, truncation_cutoff=None,
                 **synthesis_kwargs):
        if self.is_mapping:
            ws = self.mapping(z, c, truncation_psi=truncation_psi,
                              truncation_cutoff=truncation_cutoff)
            img = self.synthesis(ws, **synthesis_kwargs)
        else:
            img = self.synthesis(z, **synthesis_kwargs)  # z is pre-computed ws
        return img


# ----------------------------------------------------------------------------
if __name__ == "__main__":
    B = 2
    z_dim, c_dim, w_dim = 32, 4, 32
    img_resolution, img_channels = 16, 3

    gen = Generator(z_dim, c_dim, w_dim, img_resolution, img_channels,
                    is_mapping=True, channels=32, key=jax.random.PRNGKey(0))

    kz, kc = jax.random.split(jax.random.PRNGKey(0))
    z = jax.random.normal(kz, (B, z_dim), jnp.float32)
    labels = jax.random.randint(kc, (B,), 0, c_dim)
    c = jax.nn.one_hot(labels, c_dim, dtype=jnp.float32)

    img = gen(z, c, truncation_psi=0.7, truncation_cutoff=None)
    img = jax.block_until_ready(img)

    assert img.shape == (B, img_channels, img_resolution, img_resolution), img.shape
    assert bool(jnp.all(jnp.isfinite(img)))
    print("KERNEL_OK")
</pallas_src>

<mosaic_0001>
module attributes {stable_mosaic.version = 11 : i64} {
  func.func @_mapping_kernel(%arg0: memref<2x32xf32, #tpu.memory_space<vmem>>, %arg1: memref<2x4xf32, #tpu.memory_space<vmem>>, %arg2: memref<4x32xf32, #tpu.memory_space<vmem>>, %arg3: memref<1x32xf32, #tpu.memory_space<vmem>>, %arg4: memref<32x32xf32, #tpu.memory_space<vmem>>, %arg5: memref<32x32xf32, #tpu.memory_space<vmem>>, %arg6: memref<1x32xf32, #tpu.memory_space<vmem>>, %arg7: memref<32x32xf32, #tpu.memory_space<vmem>>, %arg8: memref<1x32xf32, #tpu.memory_space<vmem>>, %arg9: memref<2x32xf32, #tpu.memory_space<vmem>>) attributes {dimension_semantics = [], scalar_prefetch = 0 : i64, scratch_operands = 0 : i64, tpu.core_type = #tpu.core_type<tc>} {
    %c0 = arith.constant 0 : index
    %c0_0 = arith.constant 0 : index
    %0 = vector.load %arg0[%c0, %c0_0] : memref<2x32xf32, #tpu.memory_space<vmem>>, vector<2x32xf32>
    %1 = arith.mulf %0, %0 : vector<2x32xf32>
    %cst = arith.constant dense<0.000000e+00> : vector<2xf32>
    %2 = vector.multi_reduction <add>, %1, %cst [1] : vector<2x32xf32> to vector<2xf32>
    %3 = vector.shape_cast %2 : vector<2xf32> to vector<2x1xf32>
    %cst_1 = arith.constant 3.200000e+01 : f32
    %4 = vector.broadcast %cst_1 : f32 to vector<2x1xf32>
    %5 = arith.divf %3, %4 : vector<2x1xf32>
    %cst_2 = arith.constant 9.99999993E-9 : f32
    %6 = vector.broadcast %cst_2 : f32 to vector<2x1xf32>
    %7 = arith.addf %5, %6 : vector<2x1xf32>
    %8 = math.rsqrt %7 : vector<2x1xf32>
    %9 = vector.broadcast %8 : vector<2x1xf32> to vector<2x32xf32>
    %10 = arith.mulf %0, %9 : vector<2x32xf32>
    %c0_3 = arith.constant 0 : index
    %c0_4 = arith.constant 0 : index
    %11 = vector.load %arg1[%c0_3, %c0_4] : memref<2x4xf32, #tpu.memory_space<vmem>>, vector<2x4xf32>
    %c0_5 = arith.constant 0 : index
    %c0_6 = arith.constant 0 : index
    %12 = vector.load %arg2[%c0_5, %c0_6] : memref<4x32xf32, #tpu.memory_space<vmem>>, vector<4x32xf32>
    %cst_7 = arith.constant dense<0.000000e+00> : vector<2x32xf32>
    %13 = tpu.matmul %11, %12, %cst_7 {dimension_numbers = #tpu.dot_dimension_numbers<[1], [0], [0], [1], [0, 0, 1, 1], [], []>} : vector<2x4xf32>, vector<4x32xf32>, vector<2x32xf32> -> vector<2x32xf32>
    %c0_8 = arith.constant 0 : index
    %c0_9 = arith.constant 0 : index
    %14 = vector.load %arg3[%c0_8, %c0_9] : memref<1x32xf32, #tpu.memory_space<vmem>>, vector<1x32xf32>
    %15 = vector.broadcast %14 : vector<1x32xf32> to vector<2x32xf32>
    %16 = arith.addf %13, %15 : vector<2x32xf32>
    %17 = arith.mulf %16, %16 : vector<2x32xf32>
    %cst_10 = arith.constant dense<0.000000e+00> : vector<2xf32>
    %18 = vector.multi_reduction <add>, %17, %cst_10 [1] : vector<2x32xf32> to vector<2xf32>
    %19 = vector.shape_cast %18 : vector<2xf32> to vector<2x1xf32>
    %cst_11 = arith.constant 3.200000e+01 : f32
    %20 = vector.broadcast %cst_11 : f32 to vector<2x1xf32>
    %21 = arith.divf %19, %20 : vector<2x1xf32>
    %cst_12 = arith.constant 9.99999993E-9 : f32
    %22 = vector.broadcast %cst_12 : f32 to vector<2x1xf32>
    %23 = arith.addf %21, %22 : vector<2x1xf32>
    %24 = math.rsqrt %23 : vector<2x1xf32>
    %25 = vector.broadcast %24 : vector<2x1xf32> to vector<2x32xf32>
    %26 = arith.mulf %16, %25 : vector<2x32xf32>
    %c0_13 = arith.constant 0 : index
    %c0_14 = arith.constant 0 : index
    %27 = vector.load %arg4[%c0_13, %c0_14] : memref<32x32xf32, #tpu.memory_space<vmem>>, vector<32x32xf32>
    %cst_15 = arith.constant dense<0.000000e+00> : vector<2x32xf32>
    %28 = tpu.matmul %10, %27, %cst_15 {dimension_numbers = #tpu.dot_dimension_numbers<[1], [0], [0], [1], [0, 0, 1, 1], [], []>} : vector<2x32xf32>, vector<32x32xf32>, vector<2x32xf32> -> vector<2x32xf32>
    %c0_16 = arith.constant 0 : index
    %c0_17 = arith.constant 0 : index
    %29 = vector.load %arg5[%c0_16, %c0_17] : memref<32x32xf32, #tpu.memory_space<vmem>>, vector<32x32xf32>
    %cst_18 = arith.constant dense<0.000000e+00> : vector<2x32xf32>
    %30 = tpu.matmul %26, %29, %cst_18 {dimension_numbers = #tpu.dot_dimension_numbers<[1], [0], [0], [1], [0, 0, 1, 1], [], []>} : vector<2x32xf32>, vector<32x32xf32>, vector<2x32xf32> -> vector<2x32xf32>
    %31 = arith.addf %28, %30 : vector<2x32xf32>
    %c0_19 = arith.constant 0 : index
    %c0_20 = arith.constant 0 : index
    %32 = vector.load %arg6[%c0_19, %c0_20] : memref<1x32xf32, #tpu.memory_space<vmem>>, vector<1x32xf32>
    %33 = vector.broadcast %32 : vector<1x32xf32> to vector<2x32xf32>
    %34 = arith.addf %31, %33 : vector<2x32xf32>
    %cst_21 = arith.constant 0.000000e+00 : f32
    %35 = vector.broadcast %cst_21 : f32 to vector<2x32xf32>
    %36 = arith.cmpf oge, %34, %35 : vector<2x32xf32>
    %cst_22 = arith.constant 2.000000e-01 : f32
    %37 = vector.broadcast %cst_22 : f32 to vector<2x32xf32>
    %38 = arith.mulf %37, %34 : vector<2x32xf32>
    %39 = arith.select %36, %34, %38 : vector<2x32xi1>, vector<2x32xf32>
    %cst_23 = arith.constant 1.41421354 : f32
    %40 = vector.broadcast %cst_23 : f32 to vector<2x32xf32>
    %41 = arith.mulf %39, %40 : vector<2x32xf32>
    %c0_24 = arith.constant 0 : index
    %c0_25 = arith.constant 0 : index
    %42 = vector.load %arg7[%c0_24, %c0_25] : memref<32x32xf32, #tpu.memory_space<vmem>>, vector<32x32xf32>
    %cst_26 = arith.constant dense<0.000000e+00> : vector<2x32xf32>
    %43 = tpu.matmul %41, %42, %cst_26 {dimension_numbers = #tpu.dot_dimension_numbers<[1], [0], [0], [1], [0, 0, 1, 1], [], []>} : vector<2x32xf32>, vector<32x32xf32>, vector<2x32xf32> -> vector<2x32xf32>
    %c0_27 = arith.constant 0 : index
    %c0_28 = arith.constant 0 : index
    %44 = vector.load %arg8[%c0_27, %c0_28] : memref<1x32xf32, #tpu.memory_space<vmem>>, vector<1x32xf32>
    %45 = vector.broadcast %44 : vector<1x32xf32> to vector<2x32xf32>
    %46 = arith.addf %43, %45 : vector<2x32xf32>
    %cst_29 = arith.constant 0.000000e+00 : f32
    %47 = vector.broadcast %cst_29 : f32 to vector<2x32xf32>
    %48 = arith.cmpf oge, %46, %47 : vector<2x32xf32>
    %cst_30 = arith.constant 2.000000e-01 : f32
    %49 = vector.broadcast %cst_30 : f32 to vector<2x32xf32>
    %50 = arith.mulf %49, %46 : vector<2x32xf32>
    %51 = arith.select %48, %46, %50 : vector<2x32xi1>, vector<2x32xf32>
    %cst_31 = arith.constant 1.41421354 : f32
    %52 = vector.broadcast %cst_31 : f32 to vector<2x32xf32>
    %53 = arith.mulf %51, %52 : vector<2x32xf32>
    %c0_32 = arith.constant 0 : index
    %c0_33 = arith.constant 0 : index
    %54 = vector.load %arg9[%c0_32, %c0_33] : memref<2x32xf32, #tpu.memory_space<vmem>>, vector<2x32xf32>
    tpu.vector_store %arg9[%c0_32, %c0_33], %53 {strides = array<i32>} : memref<2x32xf32, #tpu.memory_space<vmem>>, vector<2x32xf32>,
    return
  }
}

</mosaic_0001>

<llo_original>
// kernel: tpu_custom_call.1
$region0: #{tpu_custom_call.1}
  #allocation0 [shape = 'u32[]', space=smem, size = 0x4, offset = 0x4, fixed_abs, tag = 'smem constant byte address 0x4 - core index']
  #allocation1 [shape = 'u32[72,128]{1,0:T(1,128)}', space=vmem, size = 0x9000, scoped, tag = 'internal scratch']
  %s0 = inlined_call_operand.hbm [shape: f32[2,32], index: 0, kind: input, shape index: {}]
  %s1 = inlined_call_operand.hbm [shape: f32[2,4], index: 1, kind: input, shape index: {}]
  %s2 = inlined_call_operand.hbm [shape: f32[4,32], index: 2, kind: input, shape index: {}]
  %s3 = inlined_call_operand.vmem [shape: f32[1,32], index: 3, kind: input, shape index: {}]
  %s4 = inlined_call_operand.hbm [shape: f32[32,32], index: 4, kind: input, shape index: {}]
  %s5 = inlined_call_operand.hbm [shape: f32[32,32], index: 5, kind: input, shape index: {}]
  %s6 = inlined_call_operand.vmem [shape: f32[1,32], index: 6, kind: input, shape index: {}]
  %s7 = inlined_call_operand.hbm [shape: f32[32,32], index: 7, kind: input, shape index: {}]
  %s8 = inlined_call_operand.vmem [shape: f32[1,32], index: 8, kind: input, shape index: {}]
  %s9 = inlined_call_operand.hbm [shape: f32[2,32], index: 9, kind: output, shape index: {}]
  %s10 = sld [smem:[#allocation0]]
  $region70: #{tpu_custom_call.1} parent=0
    _
  %s12 = ssub.s32 1, %s10
  %s13 = scalar_select 0, %s12, %s10
  $region1: #{tpu_custom_call.1} parent=0
    #allocation2 [shape = 'u8[1024]{0}', space=vmem, size = 0x400, scoped, tag = 'input window, operand 0, single buffered']
    #allocation3 [shape = 's32[1]{0}', space=sflag, size = 0x4, scoped, tag = 'scoped memory for tpu_custom_call.1']
    #allocation4 [shape = 's32[1]{0}', space=sflag, size = 0x4, scoped, tag = 'scoped memory for tpu_custom_call.1']
    #allocation5 [shape = 'u8[1024]{0}', space=vmem, size = 0x400, scoped, tag = 'input window, operand 1, single buffered']
    #allocation6 [shape = 's32[1]{0}', space=sflag, size = 0x4, scoped, tag = 'scoped memory for tpu_custom_call.1']
    #allocation7 [shape = 'u8[2048]{0}', space=vmem, size = 0x800, scoped, tag = 'input window, operand 2, single buffered']
    #allocation8 [shape = 'u8[16384]{0}', space=vmem, size = 0x4000, scoped, tag = 'input window, operand 4, single buffered']
    #allocation9 [shape = 's32[1]{0}', space=sflag, size = 0x4, scoped, tag = 'scoped memory for tpu_custom_call.1']
    #allocation10 [shape = 'u8[16384]{0}', space=vmem, size = 0x4000, scoped, tag = 'input window, operand 5, single buffered']
    #allocation11 [shape = 'u8[16384]{0}', space=vmem, size = 0x4000, scoped, tag = 'input window, operand 7, single buffered']
    #allocation12 [shape = 's32[1]{0}', space=sflag, size = 0x4, scoped, tag = 'scoped memory for tpu_custom_call.1']
    #allocation13 [shape = 'u8[1024]{0}', space=vmem, size = 0x400, scoped, tag = 'output window, operand 0, single buffered']
    %14 = vsyncpa [#allocation3], 0
    %15 = vsyncpa [#allocation6], 0
    %16 = vsyncpa [#allocation9], 0
    %17 = vsyncpa [#allocation12], 0
    %18 = vsyncpa [#allocation4], 0
    // Predicated region
    $region2: #{tpu_custom_call.1} parent=1 // pred_check
      _
    $region3: #{tpu_custom_call.1} parent=1 // pred_check_branch
      %20 = sbr.rel (0) target = $region5
    $region4: #{tpu_custom_call.1} parent=1 // pred_region
      %22 = vsyncadd [#allocation3], 0
      %s24 = sshll.u32 %s0, 4
      %s25 = int_to_ptr.hbm [resolvable:$true] %s24
      %s26 = sshll.u32 [#allocation2], 4
      %s27 = int_to_ptr.vmem [resolvable:$true] %s26
      %29 = dma.hbm_to_vmem [thread:$0]  %s25, 32, %s27, [#allocation3]
    $region5: #{tpu_custom_call.1} parent=1 // pred_fallthru
      _
    // Predicated region
    $region6: #{tpu_custom_call.1} parent=1 // pred_check
      _
    $region7: #{tpu_custom_call.1} parent=1 // pred_check_branch
      %31 = sbr.rel (0) target = $region9
    $region8: #{tpu_custom_call.1} parent=1 // pred_region
      %33 = vsyncadd [#allocation6], 0
      %s35 = sshll.u32 %s1, 4
      %s36 = int_to_ptr.hbm [resolvable:$true] %s35
      %s37 = sshll.u32 [#allocation5], 4
      %s38 = int_to_ptr.vmem [resolvable:$true] %s37
      %40 = dma.hbm_to_vmem [thread:$0]  %s36, 32, %s38, [#allocation6]
    $region9: #{tpu_custom_call.1} parent=1 // pred_fallthru
      _
    // Predicated region
    $region10: #{tpu_custom_call.1} parent=1 // pred_check
      _
    $region11: #{tpu_custom_call.1} parent=1 // pred_check_branch
      %42 = sbr.rel (0) target = $region13
    $region12: #{tpu_custom_call.1} parent=1 // pred_region
      %44 = vsyncadd [#allocation6], 0
      %s46 = sshll.u32 %s2, 4
      %s47 = int_to_ptr.hbm [resolvable:$true] %s46
      %s48 = sshll.u32 [#allocation7], 4
      %s49 = int_to_ptr.vmem [resolvable:$true] %s48
      %51 = dma.hbm_to_vmem [thread:$0]  %s47, 64, %s49, [#allocation6]
    $region13: #{tpu_custom_call.1} parent=1 // pred_fallthru
      _
    // Predicated region
    $region14: #{tpu_custom_call.1} parent=1 // pred_check
      _
    $region15: #{tpu_custom_call.1} parent=1 // pred_check_branch
      %53 = sbr.rel (0) target = $region17
    $region16: #{tpu_custom_call.1} parent=1 // pred_region
      _
    $region17: #{tpu_custom_call.1} parent=1 // pred_fallthru
      _
    // Predicated region
    $region18: #{tpu_custom_call.1} parent=1 // pred_check
      _
    $region19: #{tpu_custom_call.1} parent=1 // pred_check_branch
      %55 = sbr.rel (0) target = $region21
    $region20: #{tpu_custom_call.1} parent=1 // pred_region
      %57 = vsyncadd [#allocation9], 0
      %s58 = sshll.u32 %s4, 4
      %s59 = int_to_ptr.hbm [resolvable:$true] %s58
      %s60 = sshll.u32 [#allocation8], 4
      %s61 = int_to_ptr.vmem [resolvable:$true] %s60
      %66 = dma.hbm_to_vmem [thread:$0]  %s59, 512, %s61, [#allocation9], 128, 128, 8
    $region21: #{tpu_custom_call.1} parent=1 // pred_fallthru
      _
    // Predicated region
    $region22: #{tpu_custom_call.1} parent=1 // pred_check
      _
    $region23: #{tpu_custom_call.1} parent=1 // pred_check_branch
      %68 = sbr.rel (0) target = $region25
    $region24: #{tpu_custom_call.1} parent=1 // pred_region
      %70 = vsyncadd [#allocation9], 0
      %s71 = sshll.u32 %s5, 4
      %s72 = int_to_ptr.hbm [resolvable:$true] %s71
      %s73 = sshll.u32 [#allocation10], 4
      %s74 = int_to_ptr.vmem [resolvable:$true] %s73
      %79 = dma.hbm_to_vmem [thread:$0]  %s72, 512, %s74, [#allocation9], 128, 128, 8
    $region25: #{tpu_custom_call.1} parent=1 // pred_fallthru
      _
    // Predicated region
    $region26: #{tpu_custom_call.1} parent=1 // pred_check
      _
    $region27: #{tpu_custom_call.1} parent=1 // pred_check_branch
      %81 = sbr.rel (0) target = $region29
    $region28: #{tpu_custom_call.1} parent=1 // pred_region
      _
    $region29: #{tpu_custom_call.1} parent=1 // pred_fallthru
      _
    // Predicated region
    $region30: #{tpu_custom_call.1} parent=1 // pred_check
      _
    $region31: #{tpu_custom_call.1} parent=1 // pred_check_branch
      %83 = sbr.rel (0) target = $region33
    $region32: #{tpu_custom_call.1} parent=1 // pred_region
      %85 = vsyncadd [#allocation12], 0
      %s86 = sshll.u32 %s7, 4
      %s87 = int_to_ptr.hbm [resolvable:$true] %s86
      %s88 = sshll.u32 [#allocation11], 4
      %s89 = int_to_ptr.vmem [resolvable:$true] %s88
      %94 = dma.hbm_to_vmem [thread:$0]  %s87, 512, %s89, [#allocation12], 128, 128, 8
    $region33: #{tpu_custom_call.1} parent=1 // pred_fallthru
      _
    // Predicated region
    $region34: #{tpu_custom_call.1} parent=1 // pred_check
      _
    $region35: #{tpu_custom_call.1} parent=1 // pred_check_branch
      %96 = sbr.rel (0) target = $region37
    $region36: #{tpu_custom_call.1} parent=1 // pred_region
      _
    $region37: #{tpu_custom_call.1} parent=1 // pred_fallthru
      _
    // Predicated region
    $region38: #{tpu_custom_call.1} parent=1 // pred_check
      _
    $region39: #{tpu_custom_call.1} parent=1 // pred_check_branch
      %98 = sbr.rel (0) target = $region41
    $region40: #{tpu_custom_call.1} parent=1 // pred_region
      %100 = dma.done [#allocation3], 32
    $region41: #{tpu_custom_call.1} parent=1 // pred_fallthru
      _
    // Predicated region
    $region42: #{tpu_custom_call.1} parent=1 // pred_check
      _
    $region43: #{tpu_custom_call.1} parent=1 // pred_check_branch
      %102 = sbr.rel (0) target = $region45
    $region44: #{tpu_custom_call.1} parent=1 // pred_region
      %104 = dma.done [#allocation6], 32
    $region45: #{tpu_custom_call.1} parent=1 // pred_fallthru
      _
    // Predicated region
    $region46: #{tpu_custom_call.1} parent=1 // pred_check
      _
    $region47: #{tpu_custom_call.1} parent=1 // pred_check_branch
      %106 = sbr.rel (0) target = $region49
    $region48: #{tpu_custom_call.1} parent=1 // pred_region
      %108 = dma.done [#allocation6], 64
    $region49: #{tpu_custom_call.1} parent=1 // pred_fallthru
      _
    // Predicated region
    $region50: #{tpu_custom_call.1} parent=1 // pred_check
      _
    $region51: #{tpu_custom_call.1} parent=1 // pred_check_branch
      %110 = sbr.rel (0) target = $region53
    $region52: #{tpu_custom_call.1} parent=1 // pred_region
      %112 = dma.done [#allocation9], 512
    $region53: #{tpu_custom_call.1} parent=1 // pred_fallthru
      _
    // Predicated region
    $region54: #{tpu_custom_call.1} parent=1 // pred_check
      _
    $region55: #{tpu_custom_call.1} parent=1 // pred_check_branch
      %114 = sbr.rel (0) target = $region57
    $region56: #{tpu_custom_call.1} parent=1 // pred_region
      %116 = dma.done [#allocation9], 512
    $region57: #{tpu_custom_call.1} parent=1 // pred_fallthru
      _
    // Predicated region
    $region58: #{tpu_custom_call.1} parent=1 // pred_check
      _
    $region59: #{tpu_custom_call.1} parent=1 // pred_check_branch
      %118 = sbr.rel (0) target = $region61
    $region60: #{tpu_custom_call.1} parent=1 // pred_region
      %120 = dma.done [#allocation12], 512
    $region61: #{tpu_custom_call.1} parent=1 // pred_fallthru
      _
    %v121 = vld [vmem:[#allocation2] sm:$0x3]
    %v122 = vmul.f32 %v121, %v121
    %vm123 = vcmask 254976
    %v124 = vsel %vm123, %v122, 0.0
    %125 = vadd.xlane.f32.xlu0 %v124
    %v126 = vpop.xlane.xlu0 %125
    %v127 = vrcp.pop 32.0
    %v128 = vmul.f32 32.0, %v127
    %v129 = vsub.f32 1.0, %v128
    %v130 = vmul.f32 %v127, %v129
    %v131 = vadd.f32 %v127, %v130
    %vm132 = vweird.f32 %v127
    %v133 = vsel %vm132, %v127, %v131
    %v134 = vmul.f32 %v126, %v133
    %v135 = vadd.f32 %v134, 1e-08
    %v136 = vrsqrt.pop %v135
    %v137 = vmul.f32 %v136, %v135
    %v138 = vmul.f32 %v137, %v136
    %v139 = vmul.f32 0.5, %v138
    %v140 = vsub.f32 1.5, %v139
    %v141 = vmul.f32 %v136, %v140
    %vm142 = vweird.f32 %v135
    %vm143 = vweird.f32 %v136
    %vm144 = vmor %vm142, %vm143
    %v145 = vsel %vm144, %v136, %v141
    %v146 = vmul.f32 %v121, %v145
    %v147 = vld [vmem:[#allocation5] sm:$0x3]
    %v148 = vld [vmem:[#allocation7] sm:$0xf]
    %v149 = vld [vmem:[%s3] sm:$0x1]
    %v151 = vperm.slane %v149, 0
    %vm153 = vcmask 31744
    %v155 = vsel %vm153, %v147, 0
    %vm157 = vcmask 1043456
    %v159 = vsel %vm157, %v148, 0
    %161 = vmatpush.msra.mxu0 0.0
    %162 = vmatpush.msra.mxu0 0.0
    %163 = vmatpush.msra.mxu0 0.0
    %164 = vmatpush.msra.mxu0 0.0
    %165 = vmatpush.msra.mxu0 0.0
    %166 = vmatpush.msra.mxu0 0.0
    %167 = vmatpush.msra.mxu0 0.0
    %168 = vmatpush.msra.mxu0 0.0
    %169 = vmatpush.msra.mxu0 0.0
    %170 = vmatpush.msra.mxu0 0.0
    %171 = vmatpush.msra.mxu0 0.0
    %172 = vmatpush.msra.mxu0 0.0
    %173 = vmatpush.msra.mxu0 0.0
    %174 = vmatpush.msra.mxu0 0.0
    %175 = vmatpush.msra.mxu0 0.0
    %176 = vmatpush.msra.mxu0 %v159
    %177 = vmatmul.f32.gmra.mxu0 %v155
    %v178 = vpop.f32.mrf.mxu0
    %v179 = vadd.f32 %v151, %v178
    %180 = vdwg.mxu0
    %v181 = vmul.f32 %v179, %v179
    %v182 = vsel %vm123, %v181, 0.0
    %183 = vadd.xlane.f32.xlu0 %v182
    %v184 = vpop.xlane.xlu0 %183
    %v185 = vmul.f32 %v184, %v133
    %v186 = vadd.f32 %v185, 1e-08
    %v187 = vrsqrt.pop %v186
    %v188 = vmul.f32 %v187, %v186
    %v189 = vmul.f32 %v188, %v187
    %v190 = vmul.f32 0.5, %v189
    %v191 = vsub.f32 1.5, %v190
    %v192 = vmul.f32 %v187, %v191
    %vm193 = vweird.f32 %v186
    %vm194 = vweird.f32 %v187
    %vm195 = vmor %vm193, %vm194
    %v196 = vsel %vm195, %v187, %v192
    %v197 = vmul.f32 %v179, %v196
    %v198 = vld [vmem:[#allocation8] sm:$0xff]
    %v199 = vld [vmem:[#allocation8 + $0x8] sm:$0xff]
    %v200 = vld [vmem:[#allocation8 + $0x10] sm:$0xff]
    %v201 = vld [vmem:[#allocation8 + $0x18] sm:$0xff]
    %v202 = vld [vmem:[#allocation10] sm:$0xff]
    %v203 = vld [vmem:[#allocation10 + $0x8] sm:$0xff]
    %v204 = vld [vmem:[#allocation10 + $0x10] sm:$0xff]
    %v205 = vld [vmem:[#allocation10 + $0x18] sm:$0xff]
    %vm206 = vcmask 261120
    %v208 = vsel %vm206, %v197, 0
    %210 = vmatpush.msra.mxu0 0.0
    %211 = vmatpush.msra.mxu0 0.0
    %212 = vmatpush.msra.mxu0 0.0
    %213 = vmatpush.msra.mxu0 0.0
    %214 = vmatpush.msra.mxu0 0.0
    %215 = vmatpush.msra.mxu0 0.0
    %216 = vmatpush.msra.mxu0 0.0
    %217 = vmatpush.msra.mxu0 0.0
    %218 = vmatpush.msra.mxu0 0.0
    %219 = vmatpush.msra.mxu0 0.0
    %220 = vmatpush.msra.mxu0 0.0
    %221 = vmatpush.msra.mxu0 0.0
    %222 = vmatpush.msra.mxu0 %v205
    %223 = vmatpush.msra.mxu0 %v204
    %224 = vmatpush.msra.mxu0 %v203
    %225 = vmatpush.msra.mxu0 %v202
    %226 = vmatmul.f32.gmra.mxu0 %v208
    %v227 = vpop.f32.mrf.mxu0
    %v228 = vadd.f32 0.0, %v227
    %229 = vdwg.mxu0
    %v231 = vsel %vm206, %v146, 0
    %233 = vmatpush.msra.mxu0 0.0
    %234 = vmatpush.msra.mxu0 0.0
    %235 = vmatpush.msra.mxu0 0.0
    %236 = vmatpush.msra.mxu0 0.0
    %237 = vmatpush.msra.mxu0 0.0
    %238 = vmatpush.msra.mxu0 0.0
    %239 = vmatpush.msra.mxu0 0.0
    %240 = vmatpush.msra.mxu0 0.0
    %241 = vmatpush.msra.mxu0 0.0
    %242 = vmatpush.msra.mxu0 0.0
    %243 = vmatpush.msra.mxu0 0.0
    %244 = vmatpush.msra.mxu0 0.0
    %245 = vmatpush.msra.mxu0 %v201
    %246 = vmatpush.msra.mxu0 %v200
    %247 = vmatpush.msra.mxu0 %v199
    %248 = vmatpush.msra.mxu0 %v198
    %249 = vmatmul.f32.gmra.mxu0 %v231
    %v250 = vpop.f32.mrf.mxu0
    %v251 = vadd.f32 %v228, %v250
    %252 = vdwg.mxu0
    %v253 = vld [vmem:[%s6] sm:$0x1]
    %v255 = vperm.slane %v253, 0
    %v257 = vadd.f32 %v251, %v255
    %vm258 = vcmp.ge.f32.partialorder %v257, 0.0
    %v259 = vmul.f32 %v257, 0.2
    %v260 = vsel %vm258, %v257, %v259
    %v261 = vmul.f32 %v260, 1.4142135
    %v262 = vld [vmem:[#allocation11] sm:$0xff]
    %v263 = vld [vmem:[#allocation11 + $0x8] sm:$0xff]
    %v264 = vld [vmem:[#allocation11 + $0x10] sm:$0xff]
    %v265 = vld [vmem:[#allocation11 + $0x18] sm:$0xff]
    %v266 = vld [vmem:[%s8] sm:$0x1]
    %v268 = vperm.slane %v266, 0
    %v271 = vsel %vm206, %v261, 0
    %273 = vmatpush.msra.mxu0 0.0
    %274 = vmatpush.msra.mxu0 0.0
    %275 = vmatpush.msra.mxu0 0.0
    %276 = vmatpush.msra.mxu0 0.0
    %277 = vmatpush.msra.mxu0 0.0
    %278 = vmatpush.msra.mxu0 0.0
    %279 = vmatpush.msra.mxu0 0.0
    %280 = vmatpush.msra.mxu0 0.0
    %281 = vmatpush.msra.mxu0 0.0
    %282 = vmatpush.msra.mxu0 0.0
    %283 = vmatpush.msra.mxu0 0.0
    %284 = vmatpush.msra.mxu0 0.0
    %285 = vmatpush.msra.mxu0 %v265
    %286 = vmatpush.msra.mxu0 %v264
    %287 = vmatpush.msra.mxu0 %v263
    %288 = vmatpush.msra.mxu0 %v262
    %289 = vmatmul.f32.gmra.mxu0 %v271
    %v290 = vpop.f32.mrf.mxu0
    %v291 = vadd.f32 %v268, %v290
    %292 = vdwg.mxu0
    %vm293 = vcmp.ge.f32.partialorder %v291, 0.0
    %v294 = vmul.f32 %v291, 0.2
    %v295 = vsel %vm293, %v291, %v294
    %v296 = vmul.f32 %v295, 1.4142135
    %297 = vst.msk [vmem:[#allocation13] sm:$0x3] %vm123, %v296
    // Predicated region
    $region62: #{tpu_custom_call.1} parent=1 // pred_check
      _
    $region63: #{tpu_custom_call.1} parent=1 // pred_check_branch
      %299 = sbr.rel (0) target = $region65
    $region64: #{tpu_custom_call.1} parent=1 // pred_region
      %301 = vsyncadd [#allocation4], 0
      %s303 = sshll.u32 [#allocation13], 4
      %s304 = int_to_ptr.vmem [resolvable:$true] %s303
      %s305 = sshll.u32 %s9, 4
      %s306 = int_to_ptr.hbm [resolvable:$true] %s305
      %308 = dma.vmem_to_hbm [thread:$0]  %s304, 32, %s306, [#allocation4]
    $region65: #{tpu_custom_call.1} parent=1 // pred_fallthru
      _
    // Predicated region
    $region66: #{tpu_custom_call.1} parent=1 // pred_check
      _
    $region67: #{tpu_custom_call.1} parent=1 // pred_check_branch
      %310 = sbr.rel (0) target = $region69
    $region68: #{tpu_custom_call.1} parent=1 // pred_region
      %312 = dma.done [#allocation4], 32
    $region69: #{tpu_custom_call.1} parent=1 // pred_fallthru
      _
    %313 = vsyncpa [#allocation3], 1
    %314 = vsyncpa [#allocation6], 1
    %315 = vsyncpa [#allocation9], 1
    %316 = vsyncpa [#allocation12], 1
    %317 = vsyncpa [#allocation4], 1

</llo_original>
